<compile_context>
chip_gen: v5e
topology: v5e:2x2
jax: 0.10.0
libtpu: 0.0.40
codegen_flags: <defaults>
</compile_context>

<pallas_src>
import math

import jax
import jax.numpy as jnp
from jax.experimental import pallas as pl
from jax.experimental.pallas import tpu as pltpu


def _rmsnorm_kernel_4d(eps_sq):
    def kernel(x_ref, g_ref, o_ref):
        # x_ref/o_ref: (bB, C, tS, 128); g_ref: (1, C, 1, 1) f32, pre-scaled by sqrt(C)
        x = x_ref[...].astype(jnp.float32)
        ss = jnp.sum(x * x, axis=1, keepdims=True)            # (bB, 1, tS, 128) - VPU adds
        inv = jax.lax.rsqrt(jnp.maximum(ss, eps_sq))          # 1/max(||x||, eps), EUP
        o_ref[...] = (x * inv * g_ref[...]).astype(o_ref.dtype)
    return kernel


def _rmsnorm_kernel_3d(eps_sq):
    def kernel(x_ref, g_ref, o_ref):
        # x_ref/o_ref: (1, C, tile); g_ref: (1, C, 1) f32, pre-scaled by sqrt(C)
        x = x_ref[...].astype(jnp.float32)
        ss = jnp.sum(x * x, axis=1, keepdims=True)            # (1, 1, tile) - sublane reduce
        inv = jax.lax.rsqrt(jnp.maximum(ss, eps_sq))
        o_ref[...] = (x * inv * g_ref[...]).astype(o_ref.dtype)
    return kernel


def rmsnorm_pallas(x_nchw, g, *, eps=1e-12,
                   target_block_bytes=2 << 20,
                   vmem_limit_bytes=48 << 20):
    """x_nchw: (B, C, H, W); g: (1, C, 1, 1).  Returns (B, C, H, W)."""
    B, C, H, W = x_nchw.shape
    HW = H * W
    eps_sq = float(eps) * float(eps)

    # Fold sqrt(C) into g once, in f32, outside the kernel.
    g_scaled = g.reshape(1, C, 1, 1).astype(jnp.float32) * math.sqrt(C)

    # Size blocks against the f32 intermediates the kernel materializes.
    elems_target = max(128, target_block_bytes // 4)

    compiler_params = pltpu.CompilerParams(
        dimension_semantics=("parallel", "parallel"),
        vmem_limit_bytes=vmem_limit_bytes,
    )

    if HW % 128 == 0:
        # Lane-dense 4D layout: free, contiguous reshape (no HBM pass).
        S = HW // 128
        x4 = x_nchw.reshape(B, C, S, 128)

        per_row = C * 128
        tS_max = max(1, elems_target // per_row)
        if S <= tS_max:
            tS = S                                   # full dim: always a legal block
        else:
            tS = max(8, (tS_max // 8) * 8)           # sublane-aligned spatial tile

        spatial_grid = pl.cdiv(S, tS)
        # Batch several images per block when each image is tiny ...
        bB = min(B, max(1, elems_target // (C * tS * 128)))
        # ... but keep >= 2 steps on a parallel axis so v7x's 2 TCs both get work.
        if spatial_grid == 1 and B >= 2:
            bB = min(bB, pl.cdiv(B, 2))
        grid = (pl.cdiv(B, bB), spatial_grid)

        out4 = pl.pallas_call(
            _rmsnorm_kernel_4d(eps_sq),
            out_shape=jax.ShapeDtypeStruct((B, C, S, 128), x_nchw.dtype),
            grid_spec=pltpu.PrefetchScalarGridSpec(
                num_scalar_prefetch=0,
                grid=grid,
                in_specs=[
                    pl.BlockSpec((bB, C, tS, 128), lambda b, s: (b, 0, s, 0)),
                    pl.BlockSpec((1, C, 1, 1), lambda b, s: (0, 0, 0, 0)),
                ],
                out_specs=pl.BlockSpec((bB, C, tS, 128), lambda b, s: (b, 0, s, 0)),
            ),
            compiler_params=compiler_params,
        )(x4, g_scaled)
        return out4.reshape(B, C, H, W)

    # Fallback (HW not a multiple of 128): 3D layout with a 128-multiple lane
    # tile and a masked partial last block via cdiv (no walk-down, no giant
    # full-HW block).
    x3 = x_nchw.reshape(B, C, HW)
    if HW <= 128:
        tile = HW                                    # full dim: legal block
    else:
        tile = max(128, min((elems_target // max(1, C)) // 128 * 128,
                            (HW // 128) * 128))
    grid = (B, pl.cdiv(HW, tile))

    out3 = pl.pallas_call(
        _rmsnorm_kernel_3d(eps_sq),
        out_shape=jax.ShapeDtypeStruct((B, C, HW), x_nchw.dtype),
        grid_spec=pltpu.PrefetchScalarGridSpec(
            num_scalar_prefetch=0,
            grid=grid,
            in_specs=[
                pl.BlockSpec((1, C, tile), lambda b, s: (b, 0, s)),
                pl.BlockSpec((1, C, 1), lambda b, s: (0, 0, 0)),
            ],
            out_specs=pl.BlockSpec((1, C, tile), lambda b, s: (b, 0, s)),
        ),
        compiler_params=compiler_params,
    )(x3, g_scaled.reshape(1, C, 1))
    return out3.reshape(B, C, H, W)


def rmsnorm_ref(x_nchw, g, eps=1e-12):
    """Pure-JAX reference matching F.normalize(x, dim=1) * g * sqrt(C)."""
    C = x_nchw.shape[1]
    norm = jnp.sqrt(jnp.sum(x_nchw.astype(jnp.float32) ** 2, axis=1, keepdims=True))
    denom = jnp.maximum(norm, eps)
    return (x_nchw / denom) * g * (float(C) ** 0.5)


if __name__ == "__main__":
    key = jax.random.PRNGKey(0)
    B, C, H, W = 2, 4, 16, 16

    x = jax.random.normal(key, (B, C, H, W), dtype=jnp.float32)
    # Parameter init identical to nn.Parameter(torch.ones(1, dim, 1, 1))
    g = jnp.ones((1, C, 1, 1), dtype=jnp.float32)

    out = rmsnorm_pallas(x, g)
    out = jax.block_until_ready(out)

    ref = rmsnorm_ref(x, g)
    assert out.shape == (B, C, H, W)
    assert jnp.allclose(out, ref, atol=1e-5, rtol=1e-5)

    print("KERNEL_OK")
</pallas_src>

<mosaic_0001>
module attributes {stable_mosaic.version = 11 : i64} {
  func.func @kernel(%arg0: i32, %arg1: i32, %arg2: memref<1x4x2x128xf32, #tpu.memory_space<vmem>>, %arg3: memref<1x4x1x1xf32, #tpu.memory_space<vmem>>, %arg4: memref<1x4x2x128xf32, #tpu.memory_space<vmem>>) attributes {dimension_semantics = [#tpu.dimension_semantics<parallel>, #tpu.dimension_semantics<parallel>], iteration_bounds = array<i64: 2, 1>, scalar_prefetch = 0 : i64, scratch_operands = 0 : i64, tpu.core_type = #tpu.core_type<tc>, window_params = [{transform_indices = @transform_0, window_bounds = array<i64: 1, 4, 2, 128>}, {pipeline_mode = #tpu.pipeline_mode<synchronous>, transform_indices = @transform_1, window_bounds = array<i64: 1, 4, 1, 1>}, {transform_indices = @transform_2, window_bounds = array<i64: 1, 4, 2, 128>}]} {
    %c0 = arith.constant 0 : index
    %c0_0 = arith.constant 0 : index
    %c0_1 = arith.constant 0 : index
    %c0_2 = arith.constant 0 : index
    %0 = vector.load %arg2[%c0, %c0_0, %c0_1, %c0_2] : memref<1x4x2x128xf32, #tpu.memory_space<vmem>>, vector<1x4x2x128xf32>
    %1 = arith.mulf %0, %0 : vector<1x4x2x128xf32>
    %cst = arith.constant dense<0.000000e+00> : vector<1x2x128xf32>
    %2 = vector.multi_reduction <add>, %1, %cst [1] : vector<1x4x2x128xf32> to vector<1x2x128xf32>
    %3 = vector.shape_cast %2 : vector<1x2x128xf32> to vector<1x1x2x128xf32>
    %cst_3 = arith.constant 1.000000e-24 : f32
    %4 = vector.broadcast %cst_3 : f32 to vector<1x1x2x128xf32>
    %5 = arith.maximumf %3, %4 : vector<1x1x2x128xf32>
    %6 = math.rsqrt %5 : vector<1x1x2x128xf32>
    %7 = vector.broadcast %6 : vector<1x1x2x128xf32> to vector<1x4x2x128xf32>
    %8 = arith.mulf %0, %7 : vector<1x4x2x128xf32>
    %c0_4 = arith.constant 0 : index
    %c0_5 = arith.constant 0 : index
    %c0_6 = arith.constant 0 : index
    %c0_7 = arith.constant 0 : index
    %9 = vector.load %arg3[%c0_4, %c0_5, %c0_6, %c0_7] : memref<1x4x1x1xf32, #tpu.memory_space<vmem>>, vector<1x4x1x1xf32>
    %10 = vector.broadcast %9 : vector<1x4x1x1xf32> to vector<1x4x2x128xf32>
    %11 = arith.mulf %8, %10 : vector<1x4x2x128xf32>
    %c0_8 = arith.constant 0 : index
    %c0_9 = arith.constant 0 : index
    %c0_10 = arith.constant 0 : index
    %c0_11 = arith.constant 0 : index
    %12 = vector.load %arg4[%c0_8, %c0_9, %c0_10, %c0_11] : memref<1x4x2x128xf32, #tpu.memory_space<vmem>>, vector<1x4x2x128xf32>
    tpu.vector_store %arg4[%c0_8, %c0_9, %c0_10, %c0_11], %11 {strides = array<i32>} : memref<1x4x2x128xf32, #tpu.memory_space<vmem>>, vector<1x4x2x128xf32>,
    return
  }
  func.func @transform_0(%arg0: i32, %arg1: i32) -> (i32, i32, i32, i32) {
    %c0_i32 = arith.constant 0 : i32
    %c0_i32_0 = arith.constant 0 : i32
    %c0_i32_1 = arith.constant 0 : i32
    return %arg0, %c0_i32, %arg1, %c0_i32_0 : i32, i32, i32, i32
  }
  func.func @transform_1(%arg0: i32, %arg1: i32) -> (i32, i32, i32, i32) {
    %c0_i32 = arith.constant 0 : i32
    %c0_i32_0 = arith.constant 0 : i32
    %c0_i32_1 = arith.constant 0 : i32
    %c0_i32_2 = arith.constant 0 : i32
    %c0_i32_3 = arith.constant 0 : i32
    return %c0_i32, %c0_i32_0, %c0_i32_1, %c0_i32_2 : i32, i32, i32, i32
  }
  func.func @transform_2(%arg0: i32, %arg1: i32) -> (i32, i32, i32, i32) {
    %c0_i32 = arith.constant 0 : i32
    %c0_i32_0 = arith.constant 0 : i32
    %c0_i32_1 = arith.constant 0 : i32
    return %arg0, %c0_i32, %arg1, %c0_i32_0 : i32, i32, i32, i32
  }
}

</mosaic_0001>

<llo_original>
// kernel: tpu_custom_call.1
$region0: #{tpu_custom_call.1}
  #allocation0 [shape = 'u32[]', space=smem, size = 0x4, offset = 0x4, fixed_abs, tag = 'smem constant byte address 0x4 - core index']
  #allocation1 [shape = 'u32[72,128]{1,0:T(1,128)}', space=vmem, size = 0x9000, scoped, tag = 'internal scratch']
  %s0 = inlined_call_operand.hbm [shape: f32[2,4,2,128], index: 0, kind: input, shape index: {}]
  %s1 = inlined_call_operand.vmem [shape: f32[1,4,1,1], index: 1, kind: input, shape index: {}]
  %s2 = inlined_call_operand.hbm [shape: f32[2,4,2,128], index: 2, kind: output, shape index: {}]
  %s3 = sld [smem:[#allocation0]]
  $region45: #{tpu_custom_call.1} parent=0
    _
  %s5 = ssub.s32 1, %s3
  %s6 = scalar_select 0, %s5, %s3
  $region1: #{tpu_custom_call.1} parent=0
    #allocation2 [shape = 'u8[8192]{0}', space=vmem, size = 0x2000, scoped, tag = 'input window, operand 0']
    #allocation3 [shape = 's32[2]{0}', space=sflag, size = 0x8, scoped, tag = 'scoped memory for tpu_custom_call.1']
    #allocation4 [shape = 's32[2]{0}', space=sflag, size = 0x8, scoped, tag = 'scoped memory for tpu_custom_call.1']
    #allocation5 [shape = 'u8[8192]{0}', space=vmem, size = 0x2000, scoped, tag = 'output window, operand 0']
    %7 = vsyncpa [#allocation3], 0
    %s8 = scalar_lea.sflag [#allocation3], 1
    %9 = vsyncpa %s8, 0
    %10 = vsyncpa [#allocation4], 0
    %s11 = scalar_lea.sflag [#allocation4], 1
    %12 = vsyncpa %s11, 0
    loop: start=0, step=1, limit=4
    $region2: #{tpu_custom_call.1} parent=1 // loop_pre_header
      _
    $region3: #{tpu_custom_call.1} parent=1 // loop_header
      %s14 = sphi 0, %s18
      %p15 = scmp.ge.s32.totalorder %s14, 4
      %s21 = sphi 0, %s33
      %s22 = sphi 0, %s29
      %s23 = sphi 0, %s21
      %s24 = sphi 0, %s22
      %s25 = sphi 0, %s23
      %s26 = sphi 0, %s24
      %s38 = sphi 0, %s40
      %s41 = sphi 0, %s38
      %s42 = sphi 0, %s41
      %s58 = sphi 0, %s42
      %s62 = sphi 0, %s62
      %s64 = sphi 0, %s62
      %s65 = sphi 0, %s64
      %s79 = sphi 0, %s65
      %s87 = sphi 0, %s89
      %s90 = sphi 0, %s87
      %s91 = sphi 0, %s90
      %s107 = sphi 0, %s91
    $region4: #{tpu_custom_call.1} parent=1 // loop_header_branch
      %17 = sbr.rel (%p15) target = $region8
    $region5: #{tpu_custom_call.1} parent=1 // loop_body
      %s19 = ssub.s32 %s14, 1
      %s20 = ssub.s32 %s14, 2
      %s27 = sadd.s32 1, %s22
      %p28 = scmp.ge.s32.totalorder %s27, 1
      %s29 = scalar_select %p28, 0, %s27
      %s30 = sadd.s32 1, %s21
      %s31 = scalar_select %p28, %s30, %s21
      %p32 = scmp.ge.s32.totalorder %s31, 2
      %s33 = scalar_select %p32, 0, %s31
      %s34 = ssub.s32 %s21, %s33
      %s35 = ssub.s32 %s22, %s29
      %s36 = sor.u32 %s34, %s35
      %p37 = scmp.eq.s32.totalorder %s36, 0
      %s39 = sadd.s32 %s38, 1
      %s40 = scalar_select %p37, %s38, %s39
      %p43 = pneg %p37
      %p44 = scmp.eq.s32.totalorder %s14, 1
      %p45 = por %p43, %p44
      %p46 = scmp.ne.s32.totalorder %s38, %s41
      %p47 = scmp.eq.s32.totalorder %s14, 0
      %p48 = por %p46, %p47
      %p49 = scmp.ne.s32.totalorder %s38, %s41
      %p50 = scmp.eq.s32.totalorder %s19, 1
      %p51 = por %p49, %p50
      %p52 = scmp.ne.s32.totalorder %s41, %s42
      %p53 = scmp.eq.s32.totalorder %s19, 0
      %p54 = por %p52, %p53
      %p55 = scmp.ne.s32.totalorder %s41, %s42
      %p56 = scmp.eq.s32.totalorder %s20, 1
      %p57 = por %p55, %p56
      %p59 = scmp.ne.s32.totalorder %s42, %s58
      %p60 = scmp.eq.s32.totalorder %s20, 0
      %p61 = por %p59, %p60
      %s63 = sadd.s32 %s62, 1
      %p66 = scmp.eq.s32.totalorder %s14, 1
      %p67 = scmp.ne.s32.totalorder %s62, %s64
      %p68 = scmp.eq.s32.totalorder %s14, 0
      %p69 = por %p67, %p68
      %p70 = scmp.ne.s32.totalorder %s62, %s64
      %p71 = scmp.eq.s32.totalorder %s19, 1
      %p72 = por %p70, %p71
      %p73 = scmp.ne.s32.totalorder %s64, %s65
      %p74 = scmp.eq.s32.totalorder %s19, 0
      %p75 = por %p73, %p74
      %p76 = scmp.ne.s32.totalorder %s64, %s65
      %p77 = scmp.eq.s32.totalorder %s20, 1
      %p78 = por %p76, %p77
      %p80 = scmp.ne.s32.totalorder %s65, %s79
      %p81 = scmp.eq.s32.totalorder %s20, 0
      %p82 = por %p80, %p81
      %s83 = ssub.s32 %s21, %s33
      %s84 = ssub.s32 %s22, %s29
      %s85 = sor.u32 %s83, %s84
      %p86 = scmp.eq.s32.totalorder %s85, 0
      %s88 = sadd.s32 %s87, 1
      %s89 = scalar_select %p86, %s87, %s88
      %p92 = pneg %p86
      %p93 = scmp.eq.s32.totalorder %s14, 1
      %p94 = por %p92, %p93
      %p95 = scmp.ne.s32.totalorder %s87, %s90
      %p96 = scmp.eq.s32.totalorder %s14, 0
      %p97 = por %p95, %p96
      %p98 = scmp.ne.s32.totalorder %s87, %s90
      %p99 = scmp.eq.s32.totalorder %s19, 1
      %p100 = por %p98, %p99
      %p101 = scmp.ne.s32.totalorder %s90, %s91
      %p102 = scmp.eq.s32.totalorder %s19, 0
      %p103 = por %p101, %p102
      %p104 = scmp.ne.s32.totalorder %s90, %s91
      %p105 = scmp.eq.s32.totalorder %s20, 1
      %p106 = por %p104, %p105
      %p108 = scmp.ne.s32.totalorder %s91, %s107
      %p109 = scmp.eq.s32.totalorder %s20, 0
      %p110 = por %p108, %p109
      %p111 = scmp.le.s32.totalorder 1, %s14
      %p112 = scmp.lt.s32.totalorder %s14, 3
      %p113 = pnand %p111, %p112
      %p114 = pneg %p113
      // Predicated region
      $region9: #{tpu_custom_call.1} parent=5 // pred_check
        _
      $region10: #{tpu_custom_call.1} parent=5 // pred_check_branch
        %116 = sbr.rel (%p113) target = $region12
      $region11: #{tpu_custom_call.1} parent=5 // pred_region
        %s117 = ssub.s32 %s14, 1
        // Predicated region
        $region13: #{tpu_custom_call.1} parent=11 // pred_check
          %p118 = pneg %p75
        $region14: #{tpu_custom_call.1} parent=11 // pred_check_branch
          %120 = sbr.rel (%p118) target = $region16
        $region15: #{tpu_custom_call.1} parent=11 // pred_region
          _
        $region16: #{tpu_custom_call.1} parent=11 // pred_fallthru
          _
      $region12: #{tpu_custom_call.1} parent=5 // pred_fallthru
        _
      %p121 = scmp.lt.s32.totalorder %s14, 2
      // Predicated region
      $region17: #{tpu_custom_call.1} parent=5 // pred_check
        %p122 = pneg %p121
      $region18: #{tpu_custom_call.1} parent=5 // pred_check_branch
        %124 = sbr.rel (%p122) target = $region20
      $region19: #{tpu_custom_call.1} parent=5 // pred_region
        // Predicated region
        $region21: #{tpu_custom_call.1} parent=19 // pred_check
          %p125 = pneg %p48
        $region22: #{tpu_custom_call.1} parent=19 // pred_check_branch
          %127 = sbr.rel (%p125) target = $region24
        $region23: #{tpu_custom_call.1} parent=19 // pred_region
          %s128 = sand.u32 %s38, 1
          %s129 = scalar_lea.sflag [#allocation3], %s128
          %s130 = sand.u32 %s38, 1
          %s131 = smul.addr %s130, 8
          %s132 = scalar_lea.vmem [#allocation2], %s131
          %134 = vsyncadd %s129, 0
          %s135 = smul.addr %s21, 4
          %s136 = sadd.s32 %s22, %s135
          %s137 = smul.addr %s136, 2
          %s138 = scalar_lea.hbm %s0, %s137
          %s139 = sshll.u32 %s138, 4
          %s140 = int_to_ptr.hbm [resolvable:$true] %s139
          %s141 = sshll.u32 %s132, 4
          %s142 = int_to_ptr.vmem [resolvable:$true] %s141
          %147 = dma.hbm_to_vmem [thread:$0]  %s140, 128, %s142, %s129, 32, 32, 2
        $region24: #{tpu_custom_call.1} parent=19 // pred_fallthru
          _
      $region20: #{tpu_custom_call.1} parent=5 // pred_fallthru
        _
      %p148 = scmp.le.s32.totalorder 1, %s14
      %p149 = scmp.lt.s32.totalorder %s14, 3
      %p150 = pnand %p148, %p149
      %p151 = pneg %p150
      // Predicated region
      $region25: #{tpu_custom_call.1} parent=5 // pred_check
        _
      $region26: #{tpu_custom_call.1} parent=5 // pred_check_branch
        %153 = sbr.rel (%p150) target = $region28
      $region27: #{tpu_custom_call.1} parent=5 // pred_region
        %s154 = ssub.s32 %s14, 1
        %s155 = sand.u32 %s41, 1
        %s156 = scalar_lea.sflag [#allocation3], %s155
        %s157 = sand.u32 %s41, 1
        %s158 = smul.addr %s157, 8
        %s159 = scalar_lea.vmem [#allocation2], %s158
        // Predicated region
        $region29: #{tpu_custom_call.1} parent=27 // pred_check
          %p160 = pneg %p54
        $region30: #{tpu_custom_call.1} parent=27 // pred_check_branch
          %162 = sbr.rel (%p160) target = $region32
        $region31: #{tpu_custom_call.1} parent=27 // pred_region
          %164 = dma.done %s156, 128
        $region32: #{tpu_custom_call.1} parent=27 // pred_fallthru
          _
        %s165 = sand.u32 %s41, 1
        %s166 = scalar_lea.sflag [#allocation3], %s165
        %s167 = sand.u32 %s41, 1
        %s168 = smul.addr %s167, 8
        %s169 = scalar_lea.vmem [#allocation2], %s168
        %p170 = pneg %p54
        %p171 = pneg %p51
        %p172 = pneg %p75
        %p173 = pneg %p72
        %p174 = pneg %p103
        %p175 = pneg %p100
        %s176 = sand.u32 %s90, 1
        %s177 = scalar_lea.sflag [#allocation4], %s176
        %s178 = sand.u32 %s90, 1
        %s179 = smul.addr %s178, 8
        %s180 = scalar_lea.vmem [#allocation5], %s179
        %v181 = vld [vmem:[%s159] sm:$0x3]
        %v182 = vld [vmem:[%s159 + $0x2] sm:$0x3]
        %v183 = vld [vmem:[%s159 + $0x4] sm:$0x3]
        %v184 = vld [vmem:[%s159 + $0x6] sm:$0x3]
        %v185 = vmul.f32 %v181, %v181
        %v186 = vmul.f32 %v182, %v182
        %v187 = vmul.f32 %v183, %v183
        %v188 = vmul.f32 %v184, %v184
        %vm189 = vcmask 1041408
        %v190 = vsel %vm189, %v185, 0.0
        %v191 = vsel %vm189, %v186, 0.0
        %v192 = vadd.f32 %v190, %v191
        %v193 = vsel %vm189, %v187, 0.0
        %v194 = vadd.f32 %v192, %v193
        %v195 = vsel %vm189, %v188, 0.0
        %v196 = vadd.f32 %v194, %v195
        %v197 = vmax.f32 %v196, 1e-24
        %v198 = vrsqrt.pop %v197
        %v199 = vmul.f32 %v198, %v197
        %v200 = vmul.f32 %v199, %v198
        %v201 = vmul.f32 0.5, %v200
        %v202 = vsub.f32 1.5, %v201
        %v203 = vmul.f32 %v198, %v202
        %vm204 = vweird.f32 %v197
        %vm205 = vweird.f32 %v198
        %vm206 = vmor %vm204, %vm205
        %v207 = vsel %vm206, %v198, %v203
        %v208 = vmul.f32 %v181, %v207
        %v209 = vmul.f32 %v182, %v207
        %v210 = vmul.f32 %v183, %v207
        %v211 = vmul.f32 %v184, %v207
        %v212 = vld [vmem:[%s1] sm:$0x1]
        %v213 = vld [vmem:[%s1 + $0x1] sm:$0x1]
        %v214 = vld [vmem:[%s1 + $0x2] sm:$0x1]
        %v215 = vld [vmem:[%s1 + $0x3] sm:$0x1]
        %v220 = vperm.slane %v212, 0
        %v221 = vperm.slane %v213, 0
        %v222 = vperm.slane %v214, 0
        %v223 = vperm.slane %v215, 0
        %224 = vset.pattern.permute.xlu0 0
        %225 = vperm.xlu0 %224, %v220
        %v226 = vpop.permute.xlu0 %225
        %228 = vset.pattern.permute.xlu0 0
        %229 = vperm.xlu0 %228, %v221
        %v230 = vpop.permute.xlu0 %229
        %232 = vset.pattern.permute.xlu0 0
        %233 = vperm.xlu0 %232, %v222
        %v234 = vpop.permute.xlu0 %233
        %236 = vset.pattern.permute.xlu0 0
        %237 = vperm.xlu0 %236, %v223
        %v238 = vpop.permute.xlu0 %237
        %v240 = vmul.f32 %v208, %v226
        %v241 = vmul.f32 %v209, %v230
        %v242 = vmul.f32 %v210, %v234
        %v243 = vmul.f32 %v211, %v238
        %244 = vst [vmem:[%s180] sm:$0x3] %v240
        %245 = vst [vmem:[%s180 + $0x2] sm:$0x3] %v241
        %246 = vst [vmem:[%s180 + $0x4] sm:$0x3] %v242
        %247 = vst [vmem:[%s180 + $0x6] sm:$0x3] %v243
        %s248 = sand.u32 %s90, 1
        %s249 = scalar_lea.sflag [#allocation4], %s248
        %s250 = sand.u32 %s90, 1
        %s251 = smul.addr %s250, 8
        %s252 = scalar_lea.vmem [#allocation5], %s251
        // Predicated region
        $region33: #{tpu_custom_call.1} parent=27 // pred_check
          %p253 = pneg %p100
        $region34: #{tpu_custom_call.1} parent=27 // pred_check_branch
          %255 = sbr.rel (%p253) target = $region36
        $region35: #{tpu_custom_call.1} parent=27 // pred_region
          %257 = vsyncadd %s249, 0
          %s258 = smul.addr %s23, 4
          %s259 = sadd.s32 %s24, %s258
          %s260 = smul.addr %s259, 2
          %s261 = scalar_lea.hbm %s2, %s260
          %s262 = sshll.u32 %s252, 4
          %s263 = int_to_ptr.vmem [resolvable:$true] %s262
          %s264 = sshll.u32 %s261, 4
          %s265 = int_to_ptr.hbm [resolvable:$true] %s264
          %270 = dma.vmem_to_hbm [thread:$0]  %s263, 128, %s265, %s249, 32, 32, 2
        $region36: #{tpu_custom_call.1} parent=27 // pred_fallthru
          _
      $region28: #{tpu_custom_call.1} parent=5 // pred_fallthru
        _
      %p271 = scmp.le.s32.totalorder 2, %s14
      // Predicated region
      $region37: #{tpu_custom_call.1} parent=5 // pred_check
        %p272 = pneg %p271
      $region38: #{tpu_custom_call.1} parent=5 // pred_check_branch
        %274 = sbr.rel (%p272) target = $region40
      $region39: #{tpu_custom_call.1} parent=5 // pred_region
        %s275 = ssub.s32 %s14, 2
        // Predicated region
        $region41: #{tpu_custom_call.1} parent=39 // pred_check
          %p276 = pneg %p106
        $region42: #{tpu_custom_call.1} parent=39 // pred_check_branch
          %278 = sbr.rel (%p276) target = $region44
        $region43: #{tpu_custom_call.1} parent=39 // pred_region
          %s279 = sand.u32 %s91, 1
          %s280 = scalar_lea.sflag [#allocation4], %s279
          %s281 = sand.u32 %s91, 1
          %s282 = smul.addr %s281, 8
          %s283 = scalar_lea.vmem [#allocation5], %s282
          %285 = dma.done %s280, 128
        $region44: #{tpu_custom_call.1} parent=39 // pred_fallthru
          _
      $region40: #{tpu_custom_call.1} parent=5 // pred_fallthru
        _
    $region6: #{tpu_custom_call.1} parent=1 // loop_footer
      %s18 = sadd.s32 1, %s14
    $region7: #{tpu_custom_call.1} parent=1 // loop_footer_branch
      %13 = sbr.rel target = $region3
    $region8: #{tpu_custom_call.1} parent=1 // loop_exit
      _
    %286 = vsyncpa [#allocation3], 1
    %s287 = scalar_lea.sflag [#allocation3], 1
    %288 = vsyncpa %s287, 1
    %289 = vsyncpa [#allocation4], 1
    %s290 = scalar_lea.sflag [#allocation4], 1
    %291 = vsyncpa %s290, 1

</llo_original>
